<compile_context>
chip_gen: v5e
topology: v5e:2x2
jax: 0.10.0
libtpu: 0.0.40
codegen_flags: <defaults>
</compile_context>

<pallas_src>
import functools

import jax
import jax.numpy as jnp
from jax.experimental import pallas as pl
from jax.experimental.pallas import tpu as pltpu


# ----------------------------------------------------------------------------
# Lanczos (g=5, Numerical Recipes) log-gamma as a divide-free rational.
#   lgamma(x) = (x+0.5)*log(x+5.5) - (x+5.5) + 0.5*log(2*pi)
#               + log(P(x)) - log(x * Q(x)),        valid for x > 0
#   where  P(x)/Q(x) = A0 + sum_{j=1..6} c_j/(x+j),  Q(x) = prod_{j=1..6}(x+j).
#   NOTE: f32 overflow of the degree-7 x*Q(x) limits arguments to roughly x < 3e5.
# ----------------------------------------------------------------------------
_HALF_LOG_2PI = 0.9189385332046727  # 0.5 * log(2*pi)
_LANCZOS_A0 = 1.000000000190015
_LANCZOS_COEFS = (
    76.18009172947146,
    -86.50532032941677,
    24.01409824083091,
    -1.231739572450155,
    0.1208650973866179e-2,
    -0.5395239384953e-5,
)


def _poly_mul(a, b):
    out = [0.0] * (len(a) + len(b) - 1)
    for i, ai in enumerate(a):
        for j, bj in enumerate(b):
            out[i + j] += ai * bj
    return out


def _poly_add(a, b):
    m = max(len(a), len(b))
    a = a + [0.0] * (m - len(a))
    b = b + [0.0] * (m - len(b))
    return [x + y for x, y in zip(a, b)]


def _build_rational():
    """Combine the partial fractions into P(x), Q(x) (degree 6 each) in float64."""
    q = [1.0]
    for j in range(1, 7):
        q = _poly_mul(q, [float(j), 1.0])
    p = [_LANCZOS_A0 * v for v in q]
    for idx, cj in enumerate(_LANCZOS_COEFS, start=1):
        part = [1.0]
        for j in range(1, 7):
            if j != idx:
                part = _poly_mul(part, [float(j), 1.0])
        p = _poly_add(p, [cj * v for v in part])
    return tuple(p), tuple(q)


_P_COEFS, _Q_COEFS = _build_rational()  # ascending order, degree 6 each


def _horner(coefs, z):
    acc = coefs[-1]
    for c in reversed(coefs[:-1]):
        acc = acc * z + c
    return acc


def _lgamma(x):
    """log-gamma for x > 0, f32, no divides, 3 logs per call."""
    xg = x + 5.5
    p = _horner(_P_COEFS, x)
    qx = _horner(_Q_COEFS, x) * x          # fold the 1/x of the NR form into Q's log
    return ((x + 0.5) * jnp.log(xg) - xg + _HALF_LOG_2PI
            + jnp.log(p) - jnp.log(qx))


# ----------------------------------------------------------------------------
# Kernel
# ----------------------------------------------------------------------------
def _neg_log_dirichlet_kernel(alpha_ref, target_ref, out_ref, *, n_rows):
    i = pl.program_id(0)
    tile_n, c = alpha_ref.shape
    g = tile_n // 128                       # tile_n is always a multiple of 128

    alpha = alpha_ref[...].astype(jnp.float32)    # [tile_n, C]
    target = target_ref[...].astype(jnp.float32)  # [tile_n, C]

    # Clamp garbage rows of the (possibly overhanging) last block to neutral values
    # BEFORE any transcendental: lgamma(1) = 0 and (1-1)*log(1) = 0, so padded rows
    # contribute exactly 0 and never produce NaN/Inf.
    row_ids = jax.lax.broadcasted_iota(jnp.int32, (tile_n, c), 0)
    valid = (i * tile_n + row_ids) < n_rows
    alpha = jnp.where(valid, alpha, 1.0)
    target = jnp.where(valid, target, 1.0)

    # Element-wise part, fused and fully reduced to one scalar per block.
    # TODO(synk): when C < 128 each vreg carries only C/128 useful lanes; recovering
    # that factor needs a caller-side lane-dense repack of the [N, C] data.
    elem = _lgamma(alpha) - (alpha - 1.0) * jnp.log(target)
    partial_elem = jnp.sum(elem)

    # Per-row alpha sums, then lane-dense repack [tile_n,1] -> [g,128] before the
    # second lgamma (perf-review item #1).  Done via diag-embed + sublane reduce so
    # only well-supported ops (2-D iota, select, leading-dim reshape, axis=1 sum)
    # are used — no minor-dim-changing reshape.
    sum_col = jnp.sum(alpha, axis=1, keepdims=True)              # [tile_n, 1]
    row_col = jax.lax.broadcasted_iota(jnp.int32, (tile_n, 1), 0)
    valid_col = (i * tile_n + row_col) < n_rows
    sum_col = jnp.where(valid_col, sum_col, 1.0)                 # lgamma(1) == 0

    sub_id = jax.lax.broadcasted_iota(jnp.int32, (tile_n, 128), 0) & 127
    lane_id = jax.lax.broadcasted_iota(jnp.int32, (tile_n, 128), 1)
    scat = jnp.where(sub_id == lane_id,
                     jnp.broadcast_to(sum_col, (tile_n, 128)), 0.0)
    sum_dense = jnp.sum(scat.reshape(g, 128, 128), axis=1)       # [g, 128], lane-dense
    partial_lg = jnp.sum(_lgamma(sum_dense))

    # Lane-dense, unmasked store of this block's partial sum (kept per review).
    out_ref[...] = jnp.broadcast_to(partial_elem - partial_lg, (1, 8, 128))


# ----------------------------------------------------------------------------
# Tile / VMEM sizing
# ----------------------------------------------------------------------------
_TARGET_ELEMS = 512 * 1024        # amortize ~0.35us per-grid-step overhead
_LIVE_TEMP_ROWS = 8               # rough count of live lane-padded f32 temporaries


def _vmem_budget():
    """(per-block data budget, vmem_limit_bytes), generation-aware."""
    try:
        cap = int(pltpu.get_tpu_info().vmem_capacity_bytes)
    except Exception:
        cap = 64 * 1024 * 1024    # conservative default (v7x: 64 MiB per core)
    budget = min(max(cap // 6, 8 * 1024 * 1024), 16 * 1024 * 1024)
    limit = min(max(cap // 2, 32 * 1024 * 1024), 64 * 1024 * 1024)
    return budget, limit


def _choose_tile_n(n, c, itemsize, budget_bytes):
    lanes = ((c + 127) // 128) * 128
    # 2 inputs x 2 pipeline buffers of block data + in-kernel f32 temporaries.
    bytes_per_row = 4 * c * itemsize + _LIVE_TEMP_ROWS * lanes * 4
    max_rows_mem = budget_bytes // bytes_per_row
    target_rows = _TARGET_ELEMS // max(c, 1)
    tile = max(128, min(target_rows, max_rows_mem))
    if n >= 256:
        # Keep at least 2 grid blocks so both v7x TensorCores get work.
        half = pl.cdiv(pl.cdiv(n, 128), 2) * 128
        tile = min(tile, half)
    tile = max(128, (tile // 128) * 128)       # multiple of 128 (in-kernel repack)
    n_pad = pl.cdiv(n, 128) * 128
    return min(tile, n_pad)


# ----------------------------------------------------------------------------
# Wrapper
# ----------------------------------------------------------------------------
def neg_log_dirichlet_likelihood(alpha, target, *, tile_n=None):
    """Pallas forward of NegativeLogDirichletLikelihood. alpha, target: [N, C] -> scalar."""
    assert alpha.shape == target.shape and alpha.ndim == 2
    n, c = alpha.shape
    itemsize = alpha.dtype.itemsize

    budget, vmem_limit = _vmem_budget()
    if tile_n is None:
        tile = _choose_tile_n(n, c, itemsize, budget)
    else:
        tile = max(128, (int(tile_n) // 128) * 128)
        tile = min(tile, pl.cdiv(n, 128) * 128)
    num_blocks = pl.cdiv(n, tile)

    # Make sure the chosen block (+ estimated temporaries) actually fits the limit.
    lanes = ((c + 127) // 128) * 128
    need = 4 * tile * c * itemsize + _LIVE_TEMP_ROWS * tile * lanes * 4 + (4 << 20)
    vmem_limit = int(min(max(vmem_limit, need), 128 * 1024 * 1024))

    in_bytes = (alpha.size * alpha.dtype.itemsize
                + target.size * target.dtype.itemsize)
    out_bytes = num_blocks * 8 * 128 * 4
    cost = pl.CostEstimate(
        flops=int(45 * n * c),
        transcendentals=int(4 * n * c + 3 * n),
        bytes_accessed=int(in_bytes + out_bytes),
    )

    kernel = functools.partial(_neg_log_dirichlet_kernel, n_rows=n)

    partials = pl.pallas_call(
        kernel,
        out_shape=jax.ShapeDtypeStruct((num_blocks, 8, 128), jnp.float32),
        grid=(num_blocks,),
        in_specs=[
            pl.BlockSpec((tile, c), lambda i: (i, 0)),
            pl.BlockSpec((tile, c), lambda i: (i, 0)),
        ],
        out_specs=pl.BlockSpec((1, 8, 128), lambda i: (i, 0, 0)),
        compiler_params=pltpu.CompilerParams(
            dimension_semantics=("parallel",),
            vmem_limit_bytes=vmem_limit,
        ),
        cost_estimate=cost,
    )(alpha, target)

    # Tiny final reduction + mean (normalized by the true N) in plain JAX.
    return jnp.sum(partials[:, 0, 0]) / n


# ----------------------------------------------------------------------------
# Pure-JAX reference (matches the PyTorch module exactly).
# ----------------------------------------------------------------------------
def _reference(alpha, target):
    from jax.scipy.special import gammaln
    neg_logbeta = -jnp.sum(gammaln(alpha), axis=1) + gammaln(jnp.sum(alpha, axis=1))
    x_part = jnp.sum((alpha - 1.0) * jnp.log(target), axis=1)
    return -jnp.mean(neg_logbeta + x_part)


if __name__ == "__main__":
    key = jax.random.PRNGKey(0)
    k_a1, k_t1, k_a2, k_t2 = jax.random.split(key, 4)

    # Case 1: tiny shape, single (overhanging) block with heavy tail masking.
    # alpha includes values in (0, 0.5) to exercise the small-argument lgamma range.
    N1, C1 = 20, 48
    alpha1 = jax.random.uniform(k_a1, (N1, C1), jnp.float32, minval=0.2, maxval=3.0)
    target1 = jax.nn.softmax(jax.random.normal(k_t1, (N1, C1), jnp.float32), axis=1)
    out1 = jax.block_until_ready(neg_log_dirichlet_likelihood(alpha1, target1))
    ref1 = _reference(alpha1, target1)
    if not jnp.allclose(out1, ref1, rtol=1e-3, atol=1e-2):
        raise AssertionError(f"mismatch (single block): pallas={out1} ref={ref1}")

    # Case 2: multi-block grid (2 blocks on the parallel axis) with a masked tail.
    N2, C2 = 300, 48
    alpha2 = jax.random.uniform(k_a2, (N2, C2), jnp.float32, minval=0.2, maxval=5.0)
    target2 = jax.nn.softmax(jax.random.normal(k_t2, (N2, C2), jnp.float32), axis=1)
    out2 = jax.block_until_ready(neg_log_dirichlet_likelihood(alpha2, target2))
    ref2 = _reference(alpha2, target2)
    if not jnp.allclose(out2, ref2, rtol=1e-3, atol=1e-2):
        raise AssertionError(f"mismatch (2 blocks): pallas={out2} ref={ref2}")

    # Case 3: explicit small tile override -> 3 blocks, uneven last block.
    out3 = jax.block_until_ready(
        neg_log_dirichlet_likelihood(alpha2, target2, tile_n=128))
    if not jnp.allclose(out3, ref2, rtol=1e-3, atol=1e-2):
        raise AssertionError(f"mismatch (tile_n=128): pallas={out3} ref={ref2}")

    print("KERNEL_OK")
</pallas_src>

<mosaic_0001>
module attributes {stable_mosaic.version = 11 : i64} {
  func.func @_neg_log_dirichlet_kernel(%arg0: i32, %arg1: memref<128x48xf32, #tpu.memory_space<vmem>>, %arg2: memref<128x48xf32, #tpu.memory_space<vmem>>, %arg3: memref<1x8x128xf32, #tpu.memory_space<vmem>>) attributes {dimension_semantics = [#tpu.dimension_semantics<parallel>], iteration_bounds = array<i64: 1>, scalar_prefetch = 0 : i64, scratch_operands = 0 : i64, tpu.core_type = #tpu.core_type<tc>, window_params = [{transform_indices = @transform_0, window_bounds = array<i64: 128, 48>}, {transform_indices = @transform_1, window_bounds = array<i64: 128, 48>}, {transform_indices = @transform_2, window_bounds = array<i64: 1, 8, 128>}]} {
    %c0 = arith.constant 0 : index
    %c0_0 = arith.constant 0 : index
    %0 = vector.load %arg1[%c0, %c0_0] : memref<128x48xf32, #tpu.memory_space<vmem>>, vector<128x48xf32>
    %c0_1 = arith.constant 0 : index
    %c0_2 = arith.constant 0 : index
    %1 = vector.load %arg2[%c0_1, %c0_2] : memref<128x48xf32, #tpu.memory_space<vmem>>, vector<128x48xf32>
    %2 = tpu.iota {dimensions = array<i32: 0>} : vector<128x48xi32>
    %c128_i32 = arith.constant 128 : i32
    %3 = arith.muli %arg0, %c128_i32 : i32
    %4 = vector.broadcast %3 : i32 to vector<128x48xi32>
    %5 = arith.addi %4, %2 : vector<128x48xi32>
    %c20_i32 = arith.constant 20 : i32
    %6 = vector.broadcast %c20_i32 : i32 to vector<128x48xi32>
    %7 = arith.cmpi slt, %5, %6 : vector<128x48xi32>
    %cst = arith.constant 1.000000e+00 : f32
    %8 = vector.broadcast %cst : f32 to vector<128x48xf32>
    %9 = arith.select %7, %0, %8 : vector<128x48xi1>, vector<128x48xf32>
    %cst_3 = arith.constant 1.000000e+00 : f32
    %10 = vector.broadcast %cst_3 : f32 to vector<128x48xf32>
    %11 = arith.select %7, %1, %10 : vector<128x48xi1>, vector<128x48xf32>
    %cst_4 = arith.constant 5.500000e+00 : f32
    %12 = vector.broadcast %cst_4 : f32 to vector<128x48xf32>
    %13 = arith.addf %9, %12 : vector<128x48xf32>
    %cst_5 = arith.constant 1.000000e+00 : f32
    %14 = vector.broadcast %cst_5 : f32 to vector<128x48xf32>
    %15 = arith.mulf %14, %9 : vector<128x48xf32>
    %cst_6 = arith.constant 33.4583321 : f32
    %16 = vector.broadcast %cst_6 : f32 to vector<128x48xf32>
    %17 = arith.addf %15, %16 : vector<128x48xf32>
    %18 = arith.mulf %17, %9 : vector<128x48xf32>
    %cst_7 = arith.constant 466.334198 : f32
    %19 = vector.broadcast %cst_7 : f32 to vector<128x48xf32>
    %20 = arith.addf %18, %19 : vector<128x48xf32>
    %21 = arith.mulf %20, %9 : vector<128x48xf32>
    %cst_8 = arith.constant 3465.70947 : f32
    %22 = vector.broadcast %cst_8 : f32 to vector<128x48xf32>
    %23 = arith.addf %21, %22 : vector<128x48xf32>
    %24 = arith.mulf %23, %9 : vector<128x48xf32>
    %cst_9 = arith.constant 14484.9141 : f32
    %25 = vector.broadcast %cst_9 : f32 to vector<128x48xf32>
    %26 = arith.addf %24, %25 : vector<128x48xf32>
    %27 = arith.mulf %26, %9 : vector<128x48xf32>
    %cst_10 = arith.constant 32281.0645 : f32
    %28 = vector.broadcast %cst_10 : f32 to vector<128x48xf32>
    %29 = arith.addf %27, %28 : vector<128x48xf32>
    %30 = arith.mulf %29, %9 : vector<128x48xf32>
    %cst_11 = arith.constant 29969.5938 : f32
    %31 = vector.broadcast %cst_11 : f32 to vector<128x48xf32>
    %32 = arith.addf %30, %31 : vector<128x48xf32>
    %cst_12 = arith.constant 1.000000e+00 : f32
    %33 = vector.broadcast %cst_12 : f32 to vector<128x48xf32>
    %34 = arith.mulf %33, %9 : vector<128x48xf32>
    %cst_13 = arith.constant 2.100000e+01 : f32
    %35 = vector.broadcast %cst_13 : f32 to vector<128x48xf32>
    %36 = arith.addf %34, %35 : vector<128x48xf32>
    %37 = arith.mulf %36, %9 : vector<128x48xf32>
    %cst_14 = arith.constant 1.750000e+02 : f32
    %38 = vector.broadcast %cst_14 : f32 to vector<128x48xf32>
    %39 = arith.addf %37, %38 : vector<128x48xf32>
    %40 = arith.mulf %39, %9 : vector<128x48xf32>
    %cst_15 = arith.constant 7.350000e+02 : f32
    %41 = vector.broadcast %cst_15 : f32 to vector<128x48xf32>
    %42 = arith.addf %40, %41 : vector<128x48xf32>
    %43 = arith.mulf %42, %9 : vector<128x48xf32>
    %cst_16 = arith.constant 1.624000e+03 : f32
    %44 = vector.broadcast %cst_16 : f32 to vector<128x48xf32>
    %45 = arith.addf %43, %44 : vector<128x48xf32>
    %46 = arith.mulf %45, %9 : vector<128x48xf32>
    %cst_17 = arith.constant 1.764000e+03 : f32
    %47 = vector.broadcast %cst_17 : f32 to vector<128x48xf32>
    %48 = arith.addf %46, %47 : vector<128x48xf32>
    %49 = arith.mulf %48, %9 : vector<128x48xf32>
    %cst_18 = arith.constant 7.200000e+02 : f32
    %50 = vector.broadcast %cst_18 : f32 to vector<128x48xf32>
    %51 = arith.addf %49, %50 : vector<128x48xf32>
    %52 = arith.mulf %51, %9 : vector<128x48xf32>
    %cst_19 = arith.constant 5.000000e-01 : f32
    %53 = vector.broadcast %cst_19 : f32 to vector<128x48xf32>
    %54 = arith.addf %9, %53 : vector<128x48xf32>
    %55 = math.log %13 : vector<128x48xf32>
    %56 = arith.mulf %54, %55 : vector<128x48xf32>
    %57 = arith.subf %56, %13 : vector<128x48xf32>
    %cst_20 = arith.constant 0.918938517 : f32
    %58 = vector.broadcast %cst_20 : f32 to vector<128x48xf32>
    %59 = arith.addf %57, %58 : vector<128x48xf32>
    %60 = math.log %32 : vector<128x48xf32>
    %61 = arith.addf %59, %60 : vector<128x48xf32>
    %62 = math.log %52 : vector<128x48xf32>
    %63 = arith.subf %61, %62 : vector<128x48xf32>
    %cst_21 = arith.constant 1.000000e+00 : f32
    %64 = vector.broadcast %cst_21 : f32 to vector<128x48xf32>
    %65 = arith.subf %9, %64 : vector<128x48xf32>
    %66 = math.log %11 : vector<128x48xf32>
    %67 = arith.mulf %65, %66 : vector<128x48xf32>
    %68 = arith.subf %63, %67 : vector<128x48xf32>
    %69 = vector.shape_cast %68 : vector<128x48xf32> to vector<1x128x48xf32>
    %cst_22 = arith.constant dense<0.000000e+00> : vector<1xf32>
    %70 = vector.multi_reduction <add>, %69, %cst_22 [1, 2] : vector<1x128x48xf32> to vector<1xf32>
    %71 = vector.shape_cast %70 : vector<1xf32> to vector<1x1x1xf32>
    %72 = vector.extract %71[0, 0, 0] : f32 from vector<1x1x1xf32>
    %cst_23 = arith.constant dense<0.000000e+00> : vector<128xf32>
    %73 = vector.multi_reduction <add>, %9, %cst_23 [1] : vector<128x48xf32> to vector<128xf32>
    %74 = vector.shape_cast %73 : vector<128xf32> to vector<128x1xf32>
    %75 = tpu.iota {dimensions = array<i32: 0>} : vector<128x1xi32>
    %c128_i32_24 = arith.constant 128 : i32
    %76 = arith.muli %arg0, %c128_i32_24 : i32
    %77 = vector.broadcast %76 : i32 to vector<128x1xi32>
    %78 = arith.addi %77, %75 : vector<128x1xi32>
    %c20_i32_25 = arith.constant 20 : i32
    %79 = vector.broadcast %c20_i32_25 : i32 to vector<128x1xi32>
    %80 = arith.cmpi slt, %78, %79 : vector<128x1xi32>
    %cst_26 = arith.constant 1.000000e+00 : f32
    %81 = vector.broadcast %cst_26 : f32 to vector<128x1xf32>
    %82 = arith.select %80, %74, %81 : vector<128x1xi1>, vector<128x1xf32>
    %83 = tpu.iota {dimensions = array<i32: 0>} : vector<128x128xi32>
    %c127_i32 = arith.constant 127 : i32
    %84 = vector.broadcast %c127_i32 : i32 to vector<128x128xi32>
    %85 = arith.andi %83, %84 : vector<128x128xi32>
    %86 = tpu.iota {dimensions = array<i32: 1>} : vector<128x128xi32>
    %87 = arith.cmpi eq, %85, %86 : vector<128x128xi32>
    %88 = vector.shape_cast %82 : vector<128x1xf32> to vector<128x1xf32>
    %89 = vector.broadcast %88 : vector<128x1xf32> to vector<128x128xf32>
    %cst_27 = arith.constant 0.000000e+00 : f32
    %90 = vector.broadcast %cst_27 : f32 to vector<128x128xf32>
    %91 = arith.select %87, %89, %90 : vector<128x128xi1>, vector<128x128xf32>
    %92 = vector.shape_cast %91 : vector<128x128xf32> to vector<1x128x128xf32>
    %cst_28 = arith.constant dense<0.000000e+00> : vector<1x128xf32>
    %93 = vector.multi_reduction <add>, %92, %cst_28 [1] : vector<1x128x128xf32> to vector<1x128xf32>
    %cst_29 = arith.constant 5.500000e+00 : f32
    %94 = vector.broadcast %cst_29 : f32 to vector<1x128xf32>
    %95 = arith.addf %93, %94 : vector<1x128xf32>
    %cst_30 = arith.constant 1.000000e+00 : f32
    %96 = vector.broadcast %cst_30 : f32 to vector<1x128xf32>
    %97 = arith.mulf %96, %93 : vector<1x128xf32>
    %cst_31 = arith.constant 33.4583321 : f32
    %98 = vector.broadcast %cst_31 : f32 to vector<1x128xf32>
    %99 = arith.addf %97, %98 : vector<1x128xf32>
    %100 = arith.mulf %99, %93 : vector<1x128xf32>
    %cst_32 = arith.constant 466.334198 : f32
    %101 = vector.broadcast %cst_32 : f32 to vector<1x128xf32>
    %102 = arith.addf %100, %101 : vector<1x128xf32>
    %103 = arith.mulf %102, %93 : vector<1x128xf32>
    %cst_33 = arith.constant 3465.70947 : f32
    %104 = vector.broadcast %cst_33 : f32 to vector<1x128xf32>
    %105 = arith.addf %103, %104 : vector<1x128xf32>
    %106 = arith.mulf %105, %93 : vector<1x128xf32>
    %cst_34 = arith.constant 14484.9141 : f32
    %107 = vector.broadcast %cst_34 : f32 to vector<1x128xf32>
    %108 = arith.addf %106, %107 : vector<1x128xf32>
    %109 = arith.mulf %108, %93 : vector<1x128xf32>
    %cst_35 = arith.constant 32281.0645 : f32
    %110 = vector.broadcast %cst_35 : f32 to vector<1x128xf32>
    %111 = arith.addf %109, %110 : vector<1x128xf32>
    %112 = arith.mulf %111, %93 : vector<1x128xf32>
    %cst_36 = arith.constant 29969.5938 : f32
    %113 = vector.broadcast %cst_36 : f32 to vector<1x128xf32>
    %114 = arith.addf %112, %113 : vector<1x128xf32>
    %cst_37 = arith.constant 1.000000e+00 : f32
    %115 = vector.broadcast %cst_37 : f32 to vector<1x128xf32>
    %116 = arith.mulf %115, %93 : vector<1x128xf32>
    %cst_38 = arith.constant 2.100000e+01 : f32
    %117 = vector.broadcast %cst_38 : f32 to vector<1x128xf32>
    %118 = arith.addf %116, %117 : vector<1x128xf32>
    %119 = arith.mulf %118, %93 : vector<1x128xf32>
    %cst_39 = arith.constant 1.750000e+02 : f32
    %120 = vector.broadcast %cst_39 : f32 to vector<1x128xf32>
    %121 = arith.addf %119, %120 : vector<1x128xf32>
    %122 = arith.mulf %121, %93 : vector<1x128xf32>
    %cst_40 = arith.constant 7.350000e+02 : f32
    %123 = vector.broadcast %cst_40 : f32 to vector<1x128xf32>
    %124 = arith.addf %122, %123 : vector<1x128xf32>
    %125 = arith.mulf %124, %93 : vector<1x128xf32>
    %cst_41 = arith.constant 1.624000e+03 : f32
    %126 = vector.broadcast %cst_41 : f32 to vector<1x128xf32>
    %127 = arith.addf %125, %126 : vector<1x128xf32>
    %128 = arith.mulf %127, %93 : vector<1x128xf32>
    %cst_42 = arith.constant 1.764000e+03 : f32
    %129 = vector.broadcast %cst_42 : f32 to vector<1x128xf32>
    %130 = arith.addf %128, %129 : vector<1x128xf32>
    %131 = arith.mulf %130, %93 : vector<1x128xf32>
    %cst_43 = arith.constant 7.200000e+02 : f32
    %132 = vector.broadcast %cst_43 : f32 to vector<1x128xf32>
    %133 = arith.addf %131, %132 : vector<1x128xf32>
    %134 = arith.mulf %133, %93 : vector<1x128xf32>
    %cst_44 = arith.constant 5.000000e-01 : f32
    %135 = vector.broadcast %cst_44 : f32 to vector<1x128xf32>
    %136 = arith.addf %93, %135 : vector<1x128xf32>
    %137 = math.log %95 : vector<1x128xf32>
    %138 = arith.mulf %136, %137 : vector<1x128xf32>
    %139 = arith.subf %138, %95 : vector<1x128xf32>
    %cst_45 = arith.constant 0.918938517 : f32
    %140 = vector.broadcast %cst_45 : f32 to vector<1x128xf32>
    %141 = arith.addf %139, %140 : vector<1x128xf32>
    %142 = math.log %114 : vector<1x128xf32>
    %143 = arith.addf %141, %142 : vector<1x128xf32>
    %144 = math.log %134 : vector<1x128xf32>
    %145 = arith.subf %143, %144 : vector<1x128xf32>
    %146 = vector.shape_cast %145 : vector<1x128xf32> to vector<1x1x128xf32>
    %cst_46 = arith.constant dense<0.000000e+00> : vector<1xf32>
    %147 = vector.multi_reduction <add>, %146, %cst_46 [1, 2] : vector<1x1x128xf32> to vector<1xf32>
    %148 = vector.shape_cast %147 : vector<1xf32> to vector<1x1x1xf32>
    %149 = vector.extract %148[0, 0, 0] : f32 from vector<1x1x1xf32>
    %150 = arith.subf %72, %149 : f32
    %151 = vector.broadcast %150 : f32 to vector<1x8x128xf32>
    %c0_47 = arith.constant 0 : index
    %c0_48 = arith.constant 0 : index
    %c0_49 = arith.constant 0 : index
    %152 = vector.load %arg3[%c0_47, %c0_48, %c0_49] : memref<1x8x128xf32, #tpu.memory_space<vmem>>, vector<1x8x128xf32>
    tpu.vector_store %arg3[%c0_47, %c0_48, %c0_49], %151 {strides = array<i32>} : memref<1x8x128xf32, #tpu.memory_space<vmem>>, vector<1x8x128xf32>,
    return
  }
  func.func @transform_0(%arg0: i32) -> (i32, i32) {
    %c0_i32 = arith.constant 0 : i32
    %c0_i32_0 = arith.constant 0 : i32
    return %arg0, %c0_i32 : i32, i32
  }
  func.func @transform_1(%arg0: i32) -> (i32, i32) {
    %c0_i32 = arith.constant 0 : i32
    %c0_i32_0 = arith.constant 0 : i32
    return %arg0, %c0_i32 : i32, i32
  }
  func.func @transform_2(%arg0: i32) -> (i32, i32, i32) {
    %c0_i32 = arith.constant 0 : i32
    %c0_i32_0 = arith.constant 0 : i32
    %c0_i32_1 = arith.constant 0 : i32
    return %arg0, %c0_i32, %c0_i32_0 : i32, i32, i32
  }
}

</mosaic_0001>

<llo_original>
// kernel: tpu_custom_call.1
$region0: #{tpu_custom_call.1}
  #allocation0 [shape = 'u32[]', space=smem, size = 0x4, offset = 0x4, fixed_abs, tag = 'smem constant byte address 0x4 - core index']
  #allocation1 [shape = 'u32[72,128]{1,0:T(1,128)}', space=vmem, size = 0x9000, scoped, tag = 'internal scratch']
  %s0 = inlined_call_operand.hbm [shape: f32[20,48], index: 0, kind: input, shape index: {}]
  %s1 = inlined_call_operand.hbm [shape: f32[20,48], index: 1, kind: input, shape index: {}]
  %s2 = inlined_call_operand.hbm [shape: f32[1,8,128], index: 2, kind: output, shape index: {}]
  %s3 = sld [smem:[#allocation0]]
  $region26: #{tpu_custom_call.1} parent=0
    _
  %s5 = ssub.s32 1, %s3
  %s6 = scalar_select 0, %s5, %s3
  $region1: #{tpu_custom_call.1} parent=0
    #allocation2 [shape = 'u8[65536]{0}', space=vmem, size = 0x10000, scoped, tag = 'input window, operand 0, single buffered']
    #allocation3 [shape = 's32[1]{0}', space=sflag, size = 0x4, scoped, tag = 'scoped memory for tpu_custom_call.1']
    #allocation4 [shape = 's32[1]{0}', space=sflag, size = 0x4, scoped, tag = 'scoped memory for tpu_custom_call.1']
    #allocation5 [shape = 'u8[65536]{0}', space=vmem, size = 0x10000, scoped, tag = 'input window, operand 1, single buffered']
    #allocation6 [shape = 's32[1]{0}', space=sflag, size = 0x4, scoped, tag = 'scoped memory for tpu_custom_call.1']
    #allocation7 [shape = 'u8[4096]{0}', space=vmem, size = 0x1000, scoped, tag = 'output window, operand 0, single buffered']
    %7 = vsyncpa [#allocation3], 0
    %8 = vsyncpa [#allocation6], 0
    %9 = vsyncpa [#allocation4], 0
    // Predicated region
    $region2: #{tpu_custom_call.1} parent=1 // pred_check
      _
    $region3: #{tpu_custom_call.1} parent=1 // pred_check_branch
      %11 = sbr.rel (0) target = $region5
    $region4: #{tpu_custom_call.1} parent=1 // pred_region
      %13 = vsyncadd [#allocation3], 1664
      %s14 = sshll.u32 %s0, 4
      %s15 = int_to_ptr.hbm [resolvable:$true] %s14
      %s16 = sshll.u32 [#allocation2], 4
      %s17 = int_to_ptr.vmem [resolvable:$true] %s16
      %22 = dma.hbm_to_vmem [thread:$0]  %s15, 384, %s17, [#allocation3], 128, 128, 8
    $region5: #{tpu_custom_call.1} parent=1 // pred_fallthru
      _
    // Predicated region
    $region6: #{tpu_custom_call.1} parent=1 // pred_check
      _
    $region7: #{tpu_custom_call.1} parent=1 // pred_check_branch
      %24 = sbr.rel (0) target = $region9
    $region8: #{tpu_custom_call.1} parent=1 // pred_region
      %26 = vsyncadd [#allocation6], 1664
      %s27 = sshll.u32 %s1, 4
      %s28 = int_to_ptr.hbm [resolvable:$true] %s27
      %s29 = sshll.u32 [#allocation5], 4
      %s30 = int_to_ptr.vmem [resolvable:$true] %s29
      %35 = dma.hbm_to_vmem [thread:$0]  %s28, 384, %s30, [#allocation6], 128, 128, 8
    $region9: #{tpu_custom_call.1} parent=1 // pred_fallthru
      _
    // Predicated region
    $region10: #{tpu_custom_call.1} parent=1 // pred_check
      _
    $region11: #{tpu_custom_call.1} parent=1 // pred_check_branch
      %37 = sbr.rel (0) target = $region13
    $region12: #{tpu_custom_call.1} parent=1 // pred_region
      %39 = dma.done [#allocation3], 2048
    $region13: #{tpu_custom_call.1} parent=1 // pred_fallthru
      _
    // Predicated region
    $region14: #{tpu_custom_call.1} parent=1 // pred_check
      _
    $region15: #{tpu_custom_call.1} parent=1 // pred_check_branch
      %41 = sbr.rel (0) target = $region17
    $region16: #{tpu_custom_call.1} parent=1 // pred_region
      %43 = dma.done [#allocation6], 2048
    $region17: #{tpu_custom_call.1} parent=1 // pred_fallthru
      _
    %v44 = vld [vmem:[#allocation2] sm:$0xff]
    %v45 = vld [vmem:[#allocation2 + $0x8] sm:$0xff]
    %v46 = vld [vmem:[#allocation2 + $0x10] sm:$0xff]
    %v47 = vld [vmem:[#allocation2 + $0x18] sm:$0xff]
    %v48 = vld [vmem:[#allocation2 + $0x20] sm:$0xff]
    %v49 = vld [vmem:[#allocation2 + $0x28] sm:$0xff]
    %v50 = vld [vmem:[#allocation2 + $0x30] sm:$0xff]
    %v51 = vld [vmem:[#allocation2 + $0x38] sm:$0xff]
    %v52 = vld [vmem:[#allocation2 + $0x40] sm:$0xff]
    %v53 = vld [vmem:[#allocation2 + $0x48] sm:$0xff]
    %v54 = vld [vmem:[#allocation2 + $0x50] sm:$0xff]
    %v55 = vld [vmem:[#allocation2 + $0x58] sm:$0xff]
    %v56 = vld [vmem:[#allocation2 + $0x60] sm:$0xff]
    %v57 = vld [vmem:[#allocation2 + $0x68] sm:$0xff]
    %v58 = vld [vmem:[#allocation2 + $0x70] sm:$0xff]
    %v59 = vld [vmem:[#allocation2 + $0x78] sm:$0xff]
    %v60 = vld [vmem:[#allocation5] sm:$0xff]
    %v61 = vld [vmem:[#allocation5 + $0x8] sm:$0xff]
    %v62 = vld [vmem:[#allocation5 + $0x10] sm:$0xff]
    %v63 = vld [vmem:[#allocation5 + $0x18] sm:$0xff]
    %v64 = vld [vmem:[#allocation5 + $0x20] sm:$0xff]
    %v65 = vld [vmem:[#allocation5 + $0x28] sm:$0xff]
    %v66 = vld [vmem:[#allocation5 + $0x30] sm:$0xff]
    %v67 = vld [vmem:[#allocation5 + $0x38] sm:$0xff]
    %v68 = vld [vmem:[#allocation5 + $0x40] sm:$0xff]
    %v69 = vld [vmem:[#allocation5 + $0x48] sm:$0xff]
    %v70 = vld [vmem:[#allocation5 + $0x50] sm:$0xff]
    %v71 = vld [vmem:[#allocation5 + $0x58] sm:$0xff]
    %v72 = vld [vmem:[#allocation5 + $0x60] sm:$0xff]
    %v73 = vld [vmem:[#allocation5 + $0x68] sm:$0xff]
    %v74 = vld [vmem:[#allocation5 + $0x70] sm:$0xff]
    %v75 = vld [vmem:[#allocation5 + $0x78] sm:$0xff]
    %v76 = vlaneseq
    %v77 = vshrl.u32 %v76, 7
    %v78 = vadd.s32 %v77, 8
    %v79 = vadd.s32 %v77, 16
    %v80 = vadd.s32 %v77, 24
    %v81 = vadd.s32 %v77, 32
    %v82 = vadd.s32 %v77, 40
    %v83 = vadd.s32 %v77, 48
    %v84 = vadd.s32 %v77, 56
    %v85 = vadd.s32 %v77, 64
    %v86 = vadd.s32 %v77, 72
    %v87 = vadd.s32 %v77, 80
    %v88 = vadd.s32 %v77, 88
    %v89 = vadd.s32 %v77, 96
    %v90 = vadd.s32 %v77, 104
    %v91 = vadd.s32 %v77, 112
    %v92 = vadd.s32 %v77, 120
    %s93 = smul.u32 0, 128
    %v94 = vstv %s93
    %v95 = vadd.s32 %v94, %v77
    %v96 = vadd.s32 %v94, %v78
    %v97 = vadd.s32 %v94, %v79
    %v98 = vadd.s32 %v94, %v80
    %v99 = vadd.s32 %v94, %v81
    %v100 = vadd.s32 %v94, %v82
    %v101 = vadd.s32 %v94, %v83
    %v102 = vadd.s32 %v94, %v84
    %v103 = vadd.s32 %v94, %v85
    %v104 = vadd.s32 %v94, %v86
    %v105 = vadd.s32 %v94, %v87
    %v106 = vadd.s32 %v94, %v88
    %v107 = vadd.s32 %v94, %v89
    %v108 = vadd.s32 %v94, %v90
    %v109 = vadd.s32 %v94, %v91
    %v110 = vadd.s32 %v94, %v92
    %vm111 = vcmp.lt.s32.totalorder %v95, 20
    %vm112 = vcmp.lt.s32.totalorder %v96, 20
    %vm113 = vcmp.lt.s32.totalorder %v97, 20
    %vm114 = vcmp.lt.s32.totalorder %v98, 20
    %vm115 = vcmp.lt.s32.totalorder %v99, 20
    %vm116 = vcmp.lt.s32.totalorder %v100, 20
    %vm117 = vcmp.lt.s32.totalorder %v101, 20
    %vm118 = vcmp.lt.s32.totalorder %v102, 20
    %vm119 = vcmp.lt.s32.totalorder %v103, 20
    %vm120 = vcmp.lt.s32.totalorder %v104, 20
    %vm121 = vcmp.lt.s32.totalorder %v105, 20
    %vm122 = vcmp.lt.s32.totalorder %v106, 20
    %vm123 = vcmp.lt.s32.totalorder %v107, 20
    %vm124 = vcmp.lt.s32.totalorder %v108, 20
    %vm125 = vcmp.lt.s32.totalorder %v109, 20
    %vm126 = vcmp.lt.s32.totalorder %v110, 20
    %v127 = vsel %vm111, %v44, 1.0
    %v128 = vsel %vm112, %v45, 1.0
    %v129 = vsel %vm113, %v46, 1.0
    %v130 = vsel %vm114, %v47, 1.0
    %v131 = vsel %vm115, %v48, 1.0
    %v132 = vsel %vm116, %v49, 1.0
    %v133 = vsel %vm117, %v50, 1.0
    %v134 = vsel %vm118, %v51, 1.0
    %v135 = vsel %vm119, %v52, 1.0
    %v136 = vsel %vm120, %v53, 1.0
    %v137 = vsel %vm121, %v54, 1.0
    %v138 = vsel %vm122, %v55, 1.0
    %v139 = vsel %vm123, %v56, 1.0
    %v140 = vsel %vm124, %v57, 1.0
    %v141 = vsel %vm125, %v58, 1.0
    %v142 = vsel %vm126, %v59, 1.0
    %v143 = vsel %vm111, %v60, 1.0
    %v144 = vsel %vm112, %v61, 1.0
    %v145 = vsel %vm113, %v62, 1.0
    %v146 = vsel %vm114, %v63, 1.0
    %v147 = vsel %vm115, %v64, 1.0
    %v148 = vsel %vm116, %v65, 1.0
    %v149 = vsel %vm117, %v66, 1.0
    %v150 = vsel %vm118, %v67, 1.0
    %v151 = vsel %vm119, %v68, 1.0
    %v152 = vsel %vm120, %v69, 1.0
    %v153 = vsel %vm121, %v70, 1.0
    %v154 = vsel %vm122, %v71, 1.0
    %v155 = vsel %vm123, %v72, 1.0
    %v156 = vsel %vm124, %v73, 1.0
    %v157 = vsel %vm125, %v74, 1.0
    %v158 = vsel %vm126, %v75, 1.0
    %v159 = vadd.f32 %v127, 5.5
    %v160 = vadd.f32 %v128, 5.5
    %v161 = vadd.f32 %v129, 5.5
    %v162 = vadd.f32 %v130, 5.5
    %v163 = vadd.f32 %v131, 5.5
    %v164 = vadd.f32 %v132, 5.5
    %v165 = vadd.f32 %v133, 5.5
    %v166 = vadd.f32 %v134, 5.5
    %v167 = vadd.f32 %v135, 5.5
    %v168 = vadd.f32 %v136, 5.5
    %v169 = vadd.f32 %v137, 5.5
    %v170 = vadd.f32 %v138, 5.5
    %v171 = vadd.f32 %v139, 5.5
    %v172 = vadd.f32 %v140, 5.5
    %v173 = vadd.f32 %v141, 5.5
    %v174 = vadd.f32 %v142, 5.5
    %v175 = vadd.f32 %v127, 33.458332
    %v176 = vadd.f32 %v128, 33.458332
    %v177 = vadd.f32 %v129, 33.458332
    %v178 = vadd.f32 %v130, 33.458332
    %v179 = vadd.f32 %v131, 33.458332
    %v180 = vadd.f32 %v132, 33.458332
    %v181 = vadd.f32 %v133, 33.458332
    %v182 = vadd.f32 %v134, 33.458332
    %v183 = vadd.f32 %v135, 33.458332
    %v184 = vadd.f32 %v136, 33.458332
    %v185 = vadd.f32 %v137, 33.458332
    %v186 = vadd.f32 %v138, 33.458332
    %v187 = vadd.f32 %v139, 33.458332
    %v188 = vadd.f32 %v140, 33.458332
    %v189 = vadd.f32 %v141, 33.458332
    %v190 = vadd.f32 %v142, 33.458332
    %v191 = vmul.f32 %v175, %v127
    %v192 = vmul.f32 %v176, %v128
    %v193 = vmul.f32 %v177, %v129
    %v194 = vmul.f32 %v178, %v130
    %v195 = vmul.f32 %v179, %v131
    %v196 = vmul.f32 %v180, %v132
    %v197 = vmul.f32 %v181, %v133
    %v198 = vmul.f32 %v182, %v134
    %v199 = vmul.f32 %v183, %v135
    %v200 = vmul.f32 %v184, %v136
    %v201 = vmul.f32 %v185, %v137
    %v202 = vmul.f32 %v186, %v138
    %v203 = vmul.f32 %v187, %v139
    %v204 = vmul.f32 %v188, %v140
    %v205 = vmul.f32 %v189, %v141
    %v206 = vmul.f32 %v190, %v142
    %v207 = vadd.f32 %v191, 466.3342
    %v208 = vadd.f32 %v192, 466.3342
    %v209 = vadd.f32 %v193, 466.3342
    %v210 = vadd.f32 %v194, 466.3342
    %v211 = vadd.f32 %v195, 466.3342
    %v212 = vadd.f32 %v196, 466.3342
    %v213 = vadd.f32 %v197, 466.3342
    %v214 = vadd.f32 %v198, 466.3342
    %v215 = vadd.f32 %v199, 466.3342
    %v216 = vadd.f32 %v200, 466.3342
    %v217 = vadd.f32 %v201, 466.3342
    %v218 = vadd.f32 %v202, 466.3342
    %v219 = vadd.f32 %v203, 466.3342
    %v220 = vadd.f32 %v204, 466.3342
    %v221 = vadd.f32 %v205, 466.3342
    %v222 = vadd.f32 %v206, 466.3342
    %v223 = vmul.f32 %v207, %v127
    %v224 = vmul.f32 %v208, %v128
    %v225 = vmul.f32 %v209, %v129
    %v226 = vmul.f32 %v210, %v130
    %v227 = vmul.f32 %v211, %v131
    %v228 = vmul.f32 %v212, %v132
    %v229 = vmul.f32 %v213, %v133
    %v230 = vmul.f32 %v214, %v134
    %v231 = vmul.f32 %v215, %v135
    %v232 = vmul.f32 %v216, %v136
    %v233 = vmul.f32 %v217, %v137
    %v234 = vmul.f32 %v218, %v138
    %v235 = vmul.f32 %v219, %v139
    %v236 = vmul.f32 %v220, %v140
    %v237 = vmul.f32 %v221, %v141
    %v238 = vmul.f32 %v222, %v142
    %v239 = vadd.f32 %v223, 3465.7095
    %v240 = vadd.f32 %v224, 3465.7095
    %v241 = vadd.f32 %v225, 3465.7095
    %v242 = vadd.f32 %v226, 3465.7095
    %v243 = vadd.f32 %v227, 3465.7095
    %v244 = vadd.f32 %v228, 3465.7095
    %v245 = vadd.f32 %v229, 3465.7095
    %v246 = vadd.f32 %v230, 3465.7095
    %v247 = vadd.f32 %v231, 3465.7095
    %v248 = vadd.f32 %v232, 3465.7095
    %v249 = vadd.f32 %v233, 3465.7095
    %v250 = vadd.f32 %v234, 3465.7095
    %v251 = vadd.f32 %v235, 3465.7095
    %v252 = vadd.f32 %v236, 3465.7095
    %v253 = vadd.f32 %v237, 3465.7095
    %v254 = vadd.f32 %v238, 3465.7095
    %v255 = vmul.f32 %v239, %v127
    %v256 = vmul.f32 %v240, %v128
    %v257 = vmul.f32 %v241, %v129
    %v258 = vmul.f32 %v242, %v130
    %v259 = vmul.f32 %v243, %v131
    %v260 = vmul.f32 %v244, %v132
    %v261 = vmul.f32 %v245, %v133
    %v262 = vmul.f32 %v246, %v134
    %v263 = vmul.f32 %v247, %v135
    %v264 = vmul.f32 %v248, %v136
    %v265 = vmul.f32 %v249, %v137
    %v266 = vmul.f32 %v250, %v138
    %v267 = vmul.f32 %v251, %v139
    %v268 = vmul.f32 %v252, %v140
    %v269 = vmul.f32 %v253, %v141
    %v270 = vmul.f32 %v254, %v142
    %v271 = vadd.f32 %v255, 14484.914
    %v272 = vadd.f32 %v256, 14484.914
    %v273 = vadd.f32 %v257, 14484.914
    %v274 = vadd.f32 %v258, 14484.914
    %v275 = vadd.f32 %v259, 14484.914
    %v276 = vadd.f32 %v260, 14484.914
    %v277 = vadd.f32 %v261, 14484.914
    %v278 = vadd.f32 %v262, 14484.914
    %v279 = vadd.f32 %v263, 14484.914
    %v280 = vadd.f32 %v264, 14484.914
    %v281 = vadd.f32 %v265, 14484.914
    %v282 = vadd.f32 %v266, 14484.914
    %v283 = vadd.f32 %v267, 14484.914
    %v284 = vadd.f32 %v268, 14484.914
    %v285 = vadd.f32 %v269, 14484.914
    %v286 = vadd.f32 %v270, 14484.914
    %v287 = vmul.f32 %v271, %v127
    %v288 = vmul.f32 %v272, %v128
    %v289 = vmul.f32 %v273, %v129
    %v290 = vmul.f32 %v274, %v130
    %v291 = vmul.f32 %v275, %v131
    %v292 = vmul.f32 %v276, %v132
    %v293 = vmul.f32 %v277, %v133
    %v294 = vmul.f32 %v278, %v134
    %v295 = vmul.f32 %v279, %v135
    %v296 = vmul.f32 %v280, %v136
    %v297 = vmul.f32 %v281, %v137
    %v298 = vmul.f32 %v282, %v138
    %v299 = vmul.f32 %v283, %v139
    %v300 = vmul.f32 %v284, %v140
    %v301 = vmul.f32 %v285, %v141
    %v302 = vmul.f32 %v286, %v142
    %v303 = vadd.f32 %v287, 32281.064
    %v304 = vadd.f32 %v288, 32281.064
    %v305 = vadd.f32 %v289, 32281.064
    %v306 = vadd.f32 %v290, 32281.064
    %v307 = vadd.f32 %v291, 32281.064
    %v308 = vadd.f32 %v292, 32281.064
    %v309 = vadd.f32 %v293, 32281.064
    %v310 = vadd.f32 %v294, 32281.064
    %v311 = vadd.f32 %v295, 32281.064
    %v312 = vadd.f32 %v296, 32281.064
    %v313 = vadd.f32 %v297, 32281.064
    %v314 = vadd.f32 %v298, 32281.064
    %v315 = vadd.f32 %v299, 32281.064
    %v316 = vadd.f32 %v300, 32281.064
    %v317 = vadd.f32 %v301, 32281.064
    %v318 = vadd.f32 %v302, 32281.064
    %v319 = vmul.f32 %v303, %v127
    %v320 = vmul.f32 %v304, %v128
    %v321 = vmul.f32 %v305, %v129
    %v322 = vmul.f32 %v306, %v130
    %v323 = vmul.f32 %v307, %v131
    %v324 = vmul.f32 %v308, %v132
    %v325 = vmul.f32 %v309, %v133
    %v326 = vmul.f32 %v310, %v134
    %v327 = vmul.f32 %v311, %v135
    %v328 = vmul.f32 %v312, %v136
    %v329 = vmul.f32 %v313, %v137
    %v330 = vmul.f32 %v314, %v138
    %v331 = vmul.f32 %v315, %v139
    %v332 = vmul.f32 %v316, %v140
    %v333 = vmul.f32 %v317, %v141
    %v334 = vmul.f32 %v318, %v142
    %v335 = vadd.f32 %v319, 29969.594
    %v336 = vadd.f32 %v320, 29969.594
    %v337 = vadd.f32 %v321, 29969.594
    %v338 = vadd.f32 %v322, 29969.594
    %v339 = vadd.f32 %v323, 29969.594
    %v340 = vadd.f32 %v324, 29969.594
    %v341 = vadd.f32 %v325, 29969.594
    %v342 = vadd.f32 %v326, 29969.594
    %v343 = vadd.f32 %v327, 29969.594
    %v344 = vadd.f32 %v328, 29969.594
    %v345 = vadd.f32 %v329, 29969.594
    %v346 = vadd.f32 %v330, 29969.594
    %v347 = vadd.f32 %v331, 29969.594
    %v348 = vadd.f32 %v332, 29969.594
    %v349 = vadd.f32 %v333, 29969.594
    %v350 = vadd.f32 %v334, 29969.594
    %v351 = vadd.f32 %v127, 21.0
    %v352 = vadd.f32 %v128, 21.0
    %v353 = vadd.f32 %v129, 21.0
    %v354 = vadd.f32 %v130, 21.0
    %v355 = vadd.f32 %v131, 21.0
    %v356 = vadd.f32 %v132, 21.0
    %v357 = vadd.f32 %v133, 21.0
    %v358 = vadd.f32 %v134, 21.0
    %v359 = vadd.f32 %v135, 21.0
    %v360 = vadd.f32 %v136, 21.0
    %v361 = vadd.f32 %v137, 21.0
    %v362 = vadd.f32 %v138, 21.0
    %v363 = vadd.f32 %v139, 21.0
    %v364 = vadd.f32 %v140, 21.0
    %v365 = vadd.f32 %v141, 21.0
    %v366 = vadd.f32 %v142, 21.0
    %v367 = vmul.f32 %v351, %v127
    %v368 = vmul.f32 %v352, %v128
    %v369 = vmul.f32 %v353, %v129
    %v370 = vmul.f32 %v354, %v130
    %v371 = vmul.f32 %v355, %v131
    %v372 = vmul.f32 %v356, %v132
    %v373 = vmul.f32 %v357, %v133
    %v374 = vmul.f32 %v358, %v134
    %v375 = vmul.f32 %v359, %v135
    %v376 = vmul.f32 %v360, %v136
    %v377 = vmul.f32 %v361, %v137
    %v378 = vmul.f32 %v362, %v138
    %v379 = vmul.f32 %v363, %v139
    %v380 = vmul.f32 %v364, %v140
    %v381 = vmul.f32 %v365, %v141
    %v382 = vmul.f32 %v366, %v142
    %v383 = vadd.f32 %v367, 175.0
    %v384 = vadd.f32 %v368, 175.0
    %v385 = vadd.f32 %v369, 175.0
    %v386 = vadd.f32 %v370, 175.0
    %v387 = vadd.f32 %v371, 175.0
    %v388 = vadd.f32 %v372, 175.0
    %v389 = vadd.f32 %v373, 175.0
    %v390 = vadd.f32 %v374, 175.0
    %v391 = vadd.f32 %v375, 175.0
    %v392 = vadd.f32 %v376, 175.0
    %v393 = vadd.f32 %v377, 175.0
    %v394 = vadd.f32 %v378, 175.0
    %v395 = vadd.f32 %v379, 175.0
    %v396 = vadd.f32 %v380, 175.0
    %v397 = vadd.f32 %v381, 175.0
    %v398 = vadd.f32 %v382, 175.0
    %v399 = vmul.f32 %v383, %v127
    %v400 = vmul.f32 %v384, %v128
    %v401 = vmul.f32 %v385, %v129
    %v402 = vmul.f32 %v386, %v130
    %v403 = vmul.f32 %v387, %v131
    %v404 = vmul.f32 %v388, %v132
    %v405 = vmul.f32 %v389, %v133
    %v406 = vmul.f32 %v390, %v134
    %v407 = vmul.f32 %v391, %v135
    %v408 = vmul.f32 %v392, %v136
    %v409 = vmul.f32 %v393, %v137
    %v410 = vmul.f32 %v394, %v138
    %v411 = vmul.f32 %v395, %v139
    %v412 = vmul.f32 %v396, %v140
    %v413 = vmul.f32 %v397, %v141
    %v414 = vmul.f32 %v398, %v142
    %v415 = vadd.f32 %v399, 735.0
    %v416 = vadd.f32 %v400, 735.0
    %v417 = vadd.f32 %v401, 735.0
    %v418 = vadd.f32 %v402, 735.0
    %v419 = vadd.f32 %v403, 735.0
    %v420 = vadd.f32 %v404, 735.0
    %v421 = vadd.f32 %v405, 735.0
    %v422 = vadd.f32 %v406, 735.0
    %v423 = vadd.f32 %v407, 735.0
    %v424 = vadd.f32 %v408, 735.0
    %v425 = vadd.f32 %v409, 735.0
    %v426 = vadd.f32 %v410, 735.0
    %v427 = vadd.f32 %v411, 735.0
    %v428 = vadd.f32 %v412, 735.0
    %v429 = vadd.f32 %v413, 735.0
    %v430 = vadd.f32 %v414, 735.0
    %v431 = vmul.f32 %v415, %v127
    %v432 = vmul.f32 %v416, %v128
    %v433 = vmul.f32 %v417, %v129
    %v434 = vmul.f32 %v418, %v130
    %v435 = vmul.f32 %v419, %v131
    %v436 = vmul.f32 %v420, %v132
    %v437 = vmul.f32 %v421, %v133
    %v438 = vmul.f32 %v422, %v134
    %v439 = vmul.f32 %v423, %v135
    %v440 = vmul.f32 %v424, %v136
    %v441 = vmul.f32 %v425, %v137
    %v442 = vmul.f32 %v426, %v138
    %v443 = vmul.f32 %v427, %v139
    %v444 = vmul.f32 %v428, %v140
    %v445 = vmul.f32 %v429, %v141
    %v446 = vmul.f32 %v430, %v142
    %v447 = vadd.f32 %v431, 1624.0
    %v448 = vadd.f32 %v432, 1624.0
    %v449 = vadd.f32 %v433, 1624.0
    %v450 = vadd.f32 %v434, 1624.0
    %v451 = vadd.f32 %v435, 1624.0
    %v452 = vadd.f32 %v436, 1624.0
    %v453 = vadd.f32 %v437, 1624.0
    %v454 = vadd.f32 %v438, 1624.0
    %v455 = vadd.f32 %v439, 1624.0
    %v456 = vadd.f32 %v440, 1624.0
    %v457 = vadd.f32 %v441, 1624.0
    %v458 = vadd.f32 %v442, 1624.0
    %v459 = vadd.f32 %v443, 1624.0
    %v460 = vadd.f32 %v444, 1624.0
    %v461 = vadd.f32 %v445, 1624.0
    %v462 = vadd.f32 %v446, 1624.0
    %v463 = vmul.f32 %v447, %v127
    %v464 = vmul.f32 %v448, %v128
    %v465 = vmul.f32 %v449, %v129
    %v466 = vmul.f32 %v450, %v130
    %v467 = vmul.f32 %v451, %v131
    %v468 = vmul.f32 %v452, %v132
    %v469 = vmul.f32 %v453, %v133
    %v470 = vmul.f32 %v454, %v134
    %v471 = vmul.f32 %v455, %v135
    %v472 = vmul.f32 %v456, %v136
    %v473 = vmul.f32 %v457, %v137
    %v474 = vmul.f32 %v458, %v138
    %v475 = vmul.f32 %v459, %v139
    %v476 = vmul.f32 %v460, %v140
    %v477 = vmul.f32 %v461, %v141
    %v478 = vmul.f32 %v462, %v142
    %v479 = vadd.f32 %v463, 1764.0
    %v480 = vadd.f32 %v464, 1764.0
    %v481 = vadd.f32 %v465, 1764.0
    %v482 = vadd.f32 %v466, 1764.0
    %v483 = vadd.f32 %v467, 1764.0
    %v484 = vadd.f32 %v468, 1764.0
    %v485 = vadd.f32 %v469, 1764.0
    %v486 = vadd.f32 %v470, 1764.0
    %v487 = vadd.f32 %v471, 1764.0
    %v488 = vadd.f32 %v472, 1764.0
    %v489 = vadd.f32 %v473, 1764.0
    %v490 = vadd.f32 %v474, 1764.0
    %v491 = vadd.f32 %v475, 1764.0
    %v492 = vadd.f32 %v476, 1764.0
    %v493 = vadd.f32 %v477, 1764.0
    %v494 = vadd.f32 %v478, 1764.0
    %v495 = vmul.f32 %v479, %v127
    %v496 = vmul.f32 %v480, %v128
    %v497 = vmul.f32 %v481, %v129
    %v498 = vmul.f32 %v482, %v130
    %v499 = vmul.f32 %v483, %v131
    %v500 = vmul.f32 %v484, %v132
    %v501 = vmul.f32 %v485, %v133
    %v502 = vmul.f32 %v486, %v134
    %v503 = vmul.f32 %v487, %v135
    %v504 = vmul.f32 %v488, %v136
    %v505 = vmul.f32 %v489, %v137
    %v506 = vmul.f32 %v490, %v138
    %v507 = vmul.f32 %v491, %v139
    %v508 = vmul.f32 %v492, %v140
    %v509 = vmul.f32 %v493, %v141
    %v510 = vmul.f32 %v494, %v142
    %v511 = vadd.f32 %v495, 720.0
    %v512 = vadd.f32 %v496, 720.0
    %v513 = vadd.f32 %v497, 720.0
    %v514 = vadd.f32 %v498, 720.0
    %v515 = vadd.f32 %v499, 720.0
    %v516 = vadd.f32 %v500, 720.0
    %v517 = vadd.f32 %v501, 720.0
    %v518 = vadd.f32 %v502, 720.0
    %v519 = vadd.f32 %v503, 720.0
    %v520 = vadd.f32 %v504, 720.0
    %v521 = vadd.f32 %v505, 720.0
    %v522 = vadd.f32 %v506, 720.0
    %v523 = vadd.f32 %v507, 720.0
    %v524 = vadd.f32 %v508, 720.0
    %v525 = vadd.f32 %v509, 720.0
    %v526 = vadd.f32 %v510, 720.0
    %v527 = vmul.f32 %v511, %v127
    %v528 = vmul.f32 %v512, %v128
    %v529 = vmul.f32 %v513, %v129
    %v530 = vmul.f32 %v514, %v130
    %v531 = vmul.f32 %v515, %v131
    %v532 = vmul.f32 %v516, %v132
    %v533 = vmul.f32 %v517, %v133
    %v534 = vmul.f32 %v518, %v134
    %v535 = vmul.f32 %v519, %v135
    %v536 = vmul.f32 %v520, %v136
    %v537 = vmul.f32 %v521, %v137
    %v538 = vmul.f32 %v522, %v138
    %v539 = vmul.f32 %v523, %v139
    %v540 = vmul.f32 %v524, %v140
    %v541 = vmul.f32 %v525, %v141
    %v542 = vmul.f32 %v526, %v142
    %v543 = vadd.f32 %v127, 0.5
    %v544 = vadd.f32 %v128, 0.5
    %v545 = vadd.f32 %v129, 0.5
    %v546 = vadd.f32 %v130, 0.5
    %v547 = vadd.f32 %v131, 0.5
    %v548 = vadd.f32 %v132, 0.5
    %v549 = vadd.f32 %v133, 0.5
    %v550 = vadd.f32 %v134, 0.5
    %v551 = vadd.f32 %v135, 0.5
    %v552 = vadd.f32 %v136, 0.5
    %v553 = vadd.f32 %v137, 0.5
    %v554 = vadd.f32 %v138, 0.5
    %v555 = vadd.f32 %v139, 0.5
    %v556 = vadd.f32 %v140, 0.5
    %v557 = vadd.f32 %v141, 0.5
    %v558 = vadd.f32 %v142, 0.5
    %v559 = vlog2.pop %v159
    %v560 = vmul.f32 %v559, 0.6931472
    %v561 = vlog2.pop %v160
    %v562 = vmul.f32 %v561, 0.6931472
    %v563 = vlog2.pop %v161
    %v564 = vmul.f32 %v563, 0.6931472
    %v565 = vlog2.pop %v162
    %v566 = vmul.f32 %v565, 0.6931472
    %v567 = vlog2.pop %v163
    %v568 = vmul.f32 %v567, 0.6931472
    %v569 = vlog2.pop %v164
    %v570 = vmul.f32 %v569, 0.6931472
    %v571 = vlog2.pop %v165
    %v572 = vmul.f32 %v571, 0.6931472
    %v573 = vlog2.pop %v166
    %v574 = vmul.f32 %v573, 0.6931472
    %v575 = vlog2.pop %v167
    %v576 = vmul.f32 %v575, 0.6931472
    %v577 = vlog2.pop %v168
    %v578 = vmul.f32 %v577, 0.6931472
    %v579 = vlog2.pop %v169
    %v580 = vmul.f32 %v579, 0.6931472
    %v581 = vlog2.pop %v170
    %v582 = vmul.f32 %v581, 0.6931472
    %v583 = vlog2.pop %v171
    %v584 = vmul.f32 %v583, 0.6931472
    %v585 = vlog2.pop %v172
    %v586 = vmul.f32 %v585, 0.6931472
    %v587 = vlog2.pop %v173
    %v588 = vmul.f32 %v587, 0.6931472
    %v589 = vlog2.pop %v174
    %v590 = vmul.f32 %v589, 0.6931472
    %v591 = vmul.f32 %v543, %v560
    %v592 = vmul.f32 %v544, %v562
    %v593 = vmul.f32 %v545, %v564
    %v594 = vmul.f32 %v546, %v566
    %v595 = vmul.f32 %v547, %v568
    %v596 = vmul.f32 %v548, %v570
    %v597 = vmul.f32 %v549, %v572
    %v598 = vmul.f32 %v550, %v574
    %v599 = vmul.f32 %v551, %v576
    %v600 = vmul.f32 %v552, %v578
    %v601 = vmul.f32 %v553, %v580
    %v602 = vmul.f32 %v554, %v582
    %v603 = vmul.f32 %v555, %v584
    %v604 = vmul.f32 %v556, %v586
    %v605 = vmul.f32 %v557, %v588
    %v606 = vmul.f32 %v558, %v590
    %v607 = vsub.f32 %v591, %v159
    %v608 = vsub.f32 %v592, %v160
    %v609 = vsub.f32 %v593, %v161
    %v610 = vsub.f32 %v594, %v162
    %v611 = vsub.f32 %v595, %v163
    %v612 = vsub.f32 %v596, %v164
    %v613 = vsub.f32 %v597, %v165
    %v614 = vsub.f32 %v598, %v166
    %v615 = vsub.f32 %v599, %v167
    %v616 = vsub.f32 %v600, %v168
    %v617 = vsub.f32 %v601, %v169
    %v618 = vsub.f32 %v602, %v170
    %v619 = vsub.f32 %v603, %v171
    %v620 = vsub.f32 %v604, %v172
    %v621 = vsub.f32 %v605, %v173
    %v622 = vsub.f32 %v606, %v174
    %v623 = vadd.f32 %v607, 0.9189385
    %v624 = vadd.f32 %v608, 0.9189385
    %v625 = vadd.f32 %v609, 0.9189385
    %v626 = vadd.f32 %v610, 0.9189385
    %v627 = vadd.f32 %v611, 0.9189385
    %v628 = vadd.f32 %v612, 0.9189385
    %v629 = vadd.f32 %v613, 0.9189385
    %v630 = vadd.f32 %v614, 0.9189385
    %v631 = vadd.f32 %v615, 0.9189385
    %v632 = vadd.f32 %v616, 0.9189385
    %v633 = vadd.f32 %v617, 0.9189385
    %v634 = vadd.f32 %v618, 0.9189385
    %v635 = vadd.f32 %v619, 0.9189385
    %v636 = vadd.f32 %v620, 0.9189385
    %v637 = vadd.f32 %v621, 0.9189385
    %v638 = vadd.f32 %v622, 0.9189385
    %v639 = vlog2.pop %v335
    %v640 = vmul.f32 %v639, 0.6931472
    %v641 = vlog2.pop %v336
    %v642 = vmul.f32 %v641, 0.6931472
    %v643 = vlog2.pop %v337
    %v644 = vmul.f32 %v643, 0.6931472
    %v645 = vlog2.pop %v338
    %v646 = vmul.f32 %v645, 0.6931472
    %v647 = vlog2.pop %v339
    %v648 = vmul.f32 %v647, 0.6931472
    %v649 = vlog2.pop %v340
    %v650 = vmul.f32 %v649, 0.6931472
    %v651 = vlog2.pop %v341
    %v652 = vmul.f32 %v651, 0.6931472
    %v653 = vlog2.pop %v342
    %v654 = vmul.f32 %v653, 0.6931472
    %v655 = vlog2.pop %v343
    %v656 = vmul.f32 %v655, 0.6931472
    %v657 = vlog2.pop %v344
    %v658 = vmul.f32 %v657, 0.6931472
    %v659 = vlog2.pop %v345
    %v660 = vmul.f32 %v659, 0.6931472
    %v661 = vlog2.pop %v346
    %v662 = vmul.f32 %v661, 0.6931472
    %v663 = vlog2.pop %v347
    %v664 = vmul.f32 %v663, 0.6931472
    %v665 = vlog2.pop %v348
    %v666 = vmul.f32 %v665, 0.6931472
    %v667 = vlog2.pop %v349
    %v668 = vmul.f32 %v667, 0.6931472
    %v669 = vlog2.pop %v350
    %v670 = vmul.f32 %v669, 0.6931472
    %v671 = vadd.f32 %v623, %v640
    %v672 = vadd.f32 %v624, %v642
    %v673 = vadd.f32 %v625, %v644
    %v674 = vadd.f32 %v626, %v646
    %v675 = vadd.f32 %v627, %v648
    %v676 = vadd.f32 %v628, %v650
    %v677 = vadd.f32 %v629, %v652
    %v678 = vadd.f32 %v630, %v654
    %v679 = vadd.f32 %v631, %v656
    %v680 = vadd.f32 %v632, %v658
    %v681 = vadd.f32 %v633, %v660
    %v682 = vadd.f32 %v634, %v662
    %v683 = vadd.f32 %v635, %v664
    %v684 = vadd.f32 %v636, %v666
    %v685 = vadd.f32 %v637, %v668
    %v686 = vadd.f32 %v638, %v670
    %v687 = vlog2.pop %v527
    %v688 = vmul.f32 %v687, 0.6931472
    %v689 = vlog2.pop %v528
    %v690 = vmul.f32 %v689, 0.6931472
    %v691 = vlog2.pop %v529
    %v692 = vmul.f32 %v691, 0.6931472
    %v693 = vlog2.pop %v530
    %v694 = vmul.f32 %v693, 0.6931472
    %v695 = vlog2.pop %v531
    %v696 = vmul.f32 %v695, 0.6931472
    %v697 = vlog2.pop %v532
    %v698 = vmul.f32 %v697, 0.6931472
    %v699 = vlog2.pop %v533
    %v700 = vmul.f32 %v699, 0.6931472
    %v701 = vlog2.pop %v534
    %v702 = vmul.f32 %v701, 0.6931472
    %v703 = vlog2.pop %v535
    %v704 = vmul.f32 %v703, 0.6931472
    %v705 = vlog2.pop %v536
    %v706 = vmul.f32 %v705, 0.6931472
    %v707 = vlog2.pop %v537
    %v708 = vmul.f32 %v707, 0.6931472
    %v709 = vlog2.pop %v538
    %v710 = vmul.f32 %v709, 0.6931472
    %v711 = vlog2.pop %v539
    %v712 = vmul.f32 %v711, 0.6931472
    %v713 = vlog2.pop %v540
    %v714 = vmul.f32 %v713, 0.6931472
    %v715 = vlog2.pop %v541
    %v716 = vmul.f32 %v715, 0.6931472
    %v717 = vlog2.pop %v542
    %v718 = vmul.f32 %v717, 0.6931472
    %v719 = vsub.f32 %v671, %v688
    %v720 = vsub.f32 %v672, %v690
    %v721 = vsub.f32 %v673, %v692
    %v722 = vsub.f32 %v674, %v694
    %v723 = vsub.f32 %v675, %v696
    %v724 = vsub.f32 %v676, %v698
    %v725 = vsub.f32 %v677, %v700
    %v726 = vsub.f32 %v678, %v702
    %v727 = vsub.f32 %v679, %v704
    %v728 = vsub.f32 %v680, %v706
    %v729 = vsub.f32 %v681, %v708
    %v730 = vsub.f32 %v682, %v710
    %v731 = vsub.f32 %v683, %v712
    %v732 = vsub.f32 %v684, %v714
    %v733 = vsub.f32 %v685, %v716
    %v734 = vsub.f32 %v686, %v718
    %v735 = vsub.f32 %v127, 1.0
    %v736 = vsub.f32 %v128, 1.0
    %v737 = vsub.f32 %v129, 1.0
    %v738 = vsub.f32 %v130, 1.0
    %v739 = vsub.f32 %v131, 1.0
    %v740 = vsub.f32 %v132, 1.0
    %v741 = vsub.f32 %v133, 1.0
    %v742 = vsub.f32 %v134, 1.0
    %v743 = vsub.f32 %v135, 1.0
    %v744 = vsub.f32 %v136, 1.0
    %v745 = vsub.f32 %v137, 1.0
    %v746 = vsub.f32 %v138, 1.0
    %v747 = vsub.f32 %v139, 1.0
    %v748 = vsub.f32 %v140, 1.0
    %v749 = vsub.f32 %v141, 1.0
    %v750 = vsub.f32 %v142, 1.0
    %v751 = vlog2.pop %v143
    %v752 = vmul.f32 %v751, 0.6931472
    %v753 = vlog2.pop %v144
    %v754 = vmul.f32 %v753, 0.6931472
    %v755 = vlog2.pop %v145
    %v756 = vmul.f32 %v755, 0.6931472
    %v757 = vlog2.pop %v146
    %v758 = vmul.f32 %v757, 0.6931472
    %v759 = vlog2.pop %v147
    %v760 = vmul.f32 %v759, 0.6931472
    %v761 = vlog2.pop %v148
    %v762 = vmul.f32 %v761, 0.6931472
    %v763 = vlog2.pop %v149
    %v764 = vmul.f32 %v763, 0.6931472
    %v765 = vlog2.pop %v150
    %v766 = vmul.f32 %v765, 0.6931472
    %v767 = vlog2.pop %v151
    %v768 = vmul.f32 %v767, 0.6931472
    %v769 = vlog2.pop %v152
    %v770 = vmul.f32 %v769, 0.6931472
    %v771 = vlog2.pop %v153
    %v772 = vmul.f32 %v771, 0.6931472
    %v773 = vlog2.pop %v154
    %v774 = vmul.f32 %v773, 0.6931472
    %v775 = vlog2.pop %v155
    %v776 = vmul.f32 %v775, 0.6931472
    %v777 = vlog2.pop %v156
    %v778 = vmul.f32 %v777, 0.6931472
    %v779 = vlog2.pop %v157
    %v780 = vmul.f32 %v779, 0.6931472
    %v781 = vlog2.pop %v158
    %v782 = vmul.f32 %v781, 0.6931472
    %v783 = vmul.f32 %v735, %v752
    %v784 = vmul.f32 %v736, %v754
    %v785 = vmul.f32 %v737, %v756
    %v786 = vmul.f32 %v738, %v758
    %v787 = vmul.f32 %v739, %v760
    %v788 = vmul.f32 %v740, %v762
    %v789 = vmul.f32 %v741, %v764
    %v790 = vmul.f32 %v742, %v766
    %v791 = vmul.f32 %v743, %v768
    %v792 = vmul.f32 %v744, %v770
    %v793 = vmul.f32 %v745, %v772
    %v794 = vmul.f32 %v746, %v774
    %v795 = vmul.f32 %v747, %v776
    %v796 = vmul.f32 %v748, %v778
    %v797 = vmul.f32 %v749, %v780
    %v798 = vmul.f32 %v750, %v782
    %v799 = vsub.f32 %v719, %v783
    %v800 = vsub.f32 %v720, %v784
    %v801 = vsub.f32 %v721, %v785
    %v802 = vsub.f32 %v722, %v786
    %v803 = vsub.f32 %v723, %v787
    %v804 = vsub.f32 %v724, %v788
    %v805 = vsub.f32 %v725, %v789
    %v806 = vsub.f32 %v726, %v790
    %v807 = vsub.f32 %v727, %v791
    %v808 = vsub.f32 %v728, %v792
    %v809 = vsub.f32 %v729, %v793
    %v810 = vsub.f32 %v730, %v794
    %v811 = vsub.f32 %v731, %v795
    %v812 = vsub.f32 %v732, %v796
    %v813 = vsub.f32 %v733, %v797
    %v814 = vsub.f32 %v734, %v798
    %vm815 = vcmask 392192
    %v816 = vsel %vm815, %v799, 0.0
    %v817 = vsel %vm815, %v800, 0.0
    %v818 = vadd.f32 %v816, %v817
    %v819 = vsel %vm815, %v801, 0.0
    %v820 = vadd.f32 %v818, %v819
    %v821 = vsel %vm815, %v802, 0.0
    %v822 = vadd.f32 %v820, %v821
    %v823 = vsel %vm815, %v803, 0.0
    %v824 = vadd.f32 %v822, %v823
    %v825 = vsel %vm815, %v804, 0.0
    %v826 = vadd.f32 %v824, %v825
    %v827 = vsel %vm815, %v805, 0.0
    %v828 = vadd.f32 %v826, %v827
    %v829 = vsel %vm815, %v806, 0.0
    %v830 = vadd.f32 %v828, %v829
    %v831 = vsel %vm815, %v807, 0.0
    %v832 = vadd.f32 %v830, %v831
    %v833 = vsel %vm815, %v808, 0.0
    %v834 = vadd.f32 %v832, %v833
    %v835 = vsel %vm815, %v809, 0.0
    %v836 = vadd.f32 %v834, %v835
    %v837 = vsel %vm815, %v810, 0.0
    %v838 = vadd.f32 %v836, %v837
    %v839 = vsel %vm815, %v811, 0.0
    %v840 = vadd.f32 %v838, %v839
    %v841 = vsel %vm815, %v812, 0.0
    %v842 = vadd.f32 %v840, %v841
    %v843 = vsel %vm815, %v813, 0.0
    %v844 = vadd.f32 %v842, %v843
    %v845 = vsel %vm815, %v814, 0.0
    %v846 = vadd.f32 %v844, %v845
    %847 = vadd.xlane.f32.xlu0 %v846
    %v848 = vpop.xlane.xlu0 %847
    %v849 = vrot.slane %v848, 4
    %v850 = vadd.f32 %v848, %v849
    %v851 = vrot.slane %v850, 2
    %v852 = vadd.f32 %v850, %v851
    %v853 = vrot.slane %v852, 1
    %v854 = vadd.f32 %v852, %v853
    %s855 = vtos %v854
    %v856 = vsel %vm815, %v127, 0.0
    %857 = vadd.xlane.f32.xlu0 %v856
    %v858 = vpop.xlane.xlu0 %857
    %v859 = vsel %vm815, %v128, 0.0
    %860 = vadd.xlane.f32.xlu0 %v859
    %v861 = vpop.xlane.xlu0 %860
    %v862 = vsel %vm815, %v129, 0.0
    %863 = vadd.xlane.f32.xlu0 %v862
    %v864 = vpop.xlane.xlu0 %863
    %v865 = vsel %vm815, %v130, 0.0
    %866 = vadd.xlane.f32.xlu0 %v865
    %v867 = vpop.xlane.xlu0 %866
    %v868 = vsel %vm815, %v131, 0.0
    %869 = vadd.xlane.f32.xlu0 %v868
    %v870 = vpop.xlane.xlu0 %869
    %v871 = vsel %vm815, %v132, 0.0
    %872 = vadd.xlane.f32.xlu0 %v871
    %v873 = vpop.xlane.xlu0 %872
    %v874 = vsel %vm815, %v133, 0.0
    %875 = vadd.xlane.f32.xlu0 %v874
    %v876 = vpop.xlane.xlu0 %875
    %v877 = vsel %vm815, %v134, 0.0
    %878 = vadd.xlane.f32.xlu0 %v877
    %v879 = vpop.xlane.xlu0 %878
    %v880 = vsel %vm815, %v135, 0.0
    %881 = vadd.xlane.f32.xlu0 %v880
    %v882 = vpop.xlane.xlu0 %881
    %v883 = vsel %vm815, %v136, 0.0
    %884 = vadd.xlane.f32.xlu0 %v883
    %v885 = vpop.xlane.xlu0 %884
    %v886 = vsel %vm815, %v137, 0.0
    %887 = vadd.xlane.f32.xlu0 %v886
    %v888 = vpop.xlane.xlu0 %887
    %v889 = vsel %vm815, %v138, 0.0
    %890 = vadd.xlane.f32.xlu0 %v889
    %v891 = vpop.xlane.xlu0 %890
    %v892 = vsel %vm815, %v139, 0.0
    %893 = vadd.xlane.f32.xlu0 %v892
    %v894 = vpop.xlane.xlu0 %893
    %v895 = vsel %vm815, %v140, 0.0
    %896 = vadd.xlane.f32.xlu0 %v895
    %v897 = vpop.xlane.xlu0 %896
    %v898 = vsel %vm815, %v141, 0.0
    %899 = vadd.xlane.f32.xlu0 %v898
    %v900 = vpop.xlane.xlu0 %899
    %v901 = vsel %vm815, %v142, 0.0
    %902 = vadd.xlane.f32.xlu0 %v901
    %v903 = vpop.xlane.xlu0 %902
    %v904 = vsel %vm111, %v858, 1.0
    %v905 = vsel %vm112, %v861, 1.0
    %v906 = vsel %vm113, %v864, 1.0
    %v907 = vsel %vm114, %v867, 1.0
    %v908 = vsel %vm115, %v870, 1.0
    %v909 = vsel %vm116, %v873, 1.0
    %v910 = vsel %vm117, %v876, 1.0
    %v911 = vsel %vm118, %v879, 1.0
    %v912 = vsel %vm119, %v882, 1.0
    %v913 = vsel %vm120, %v885, 1.0
    %v914 = vsel %vm121, %v888, 1.0
    %v915 = vsel %vm122, %v891, 1.0
    %v916 = vsel %vm123, %v894, 1.0
    %v917 = vsel %vm124, %v897, 1.0
    %v918 = vsel %vm125, %v900, 1.0
    %v919 = vsel %vm126, %v903, 1.0
    %v920 = vand.u32 %v77, 127
    %v921 = vand.u32 %v78, 127
    %v922 = vand.u32 %v79, 127
    %v923 = vand.u32 %v80, 127
    %v924 = vand.u32 %v81, 127
    %v925 = vand.u32 %v82, 127
    %v926 = vand.u32 %v83, 127
    %v927 = vand.u32 %v84, 127
    %v928 = vand.u32 %v85, 127
    %v929 = vand.u32 %v86, 127
    %v930 = vand.u32 %v87, 127
    %v931 = vand.u32 %v88, 127
    %v932 = vand.u32 %v89, 127
    %v933 = vand.u32 %v90, 127
    %v934 = vand.u32 %v91, 127
    %v935 = vand.u32 %v92, 127
    %v936 = vlaneseq
    %v937 = vand.u32 %v936, 127
    %vm938 = vcmp.eq.s32.totalorder %v920, %v937
    %vm939 = vcmp.eq.s32.totalorder %v921, %v937
    %vm940 = vcmp.eq.s32.totalorder %v922, %v937
    %vm941 = vcmp.eq.s32.totalorder %v923, %v937
    %vm942 = vcmp.eq.s32.totalorder %v924, %v937
    %vm943 = vcmp.eq.s32.totalorder %v925, %v937
    %vm944 = vcmp.eq.s32.totalorder %v926, %v937
    %vm945 = vcmp.eq.s32.totalorder %v927, %v937
    %vm946 = vcmp.eq.s32.totalorder %v928, %v937
    %vm947 = vcmp.eq.s32.totalorder %v929, %v937
    %vm948 = vcmp.eq.s32.totalorder %v930, %v937
    %vm949 = vcmp.eq.s32.totalorder %v931, %v937
    %vm950 = vcmp.eq.s32.totalorder %v932, %v937
    %vm951 = vcmp.eq.s32.totalorder %v933, %v937
    %vm952 = vcmp.eq.s32.totalorder %v934, %v937
    %vm953 = vcmp.eq.s32.totalorder %v935, %v937
    %v954 = vsel %vm938, %v904, 0.0
    %v955 = vsel %vm939, %v905, 0.0
    %v956 = vsel %vm940, %v906, 0.0
    %v957 = vsel %vm941, %v907, 0.0
    %v958 = vsel %vm942, %v908, 0.0
    %v959 = vsel %vm943, %v909, 0.0
    %v960 = vsel %vm944, %v910, 0.0
    %v961 = vsel %vm945, %v911, 0.0
    %v962 = vsel %vm946, %v912, 0.0
    %v963 = vsel %vm947, %v913, 0.0
    %v964 = vsel %vm948, %v914, 0.0
    %v965 = vsel %vm949, %v915, 0.0
    %v966 = vsel %vm950, %v916, 0.0
    %v967 = vsel %vm951, %v917, 0.0
    %v968 = vsel %vm952, %v918, 0.0
    %v969 = vsel %vm953, %v919, 0.0
    %v970 = vadd.f32 %v954, %v955
    %v971 = vadd.f32 %v970, %v956
    %v972 = vadd.f32 %v971, %v957
    %v973 = vadd.f32 %v972, %v958
    %v974 = vadd.f32 %v973, %v959
    %v975 = vadd.f32 %v974, %v960
    %v976 = vadd.f32 %v975, %v961
    %v977 = vadd.f32 %v976, %v962
    %v978 = vadd.f32 %v977, %v963
    %v979 = vadd.f32 %v978, %v964
    %v980 = vadd.f32 %v979, %v965
    %v981 = vadd.f32 %v980, %v966
    %v982 = vadd.f32 %v981, %v967
    %v983 = vadd.f32 %v982, %v968
    %v984 = vadd.f32 %v983, %v969
    %v985 = vrot.slane %v984, 4
    %v986 = vadd.f32 %v984, %v985
    %v987 = vrot.slane %v986, 2
    %v988 = vadd.f32 %v986, %v987
    %v989 = vrot.slane %v988, 1
    %v990 = vadd.f32 %v988, %v989
    %v991 = vadd.f32 %v990, 5.5
    %v992 = vadd.f32 %v990, 33.458332
    %v993 = vmul.f32 %v992, %v990
    %v994 = vadd.f32 %v993, 466.3342
    %v995 = vmul.f32 %v994, %v990
    %v996 = vadd.f32 %v995, 3465.7095
    %v997 = vmul.f32 %v996, %v990
    %v998 = vadd.f32 %v997, 14484.914
    %v999 = vmul.f32 %v998, %v990
    %v1000 = vadd.f32 %v999, 32281.064
    %v1001 = vmul.f32 %v1000, %v990
    %v1002 = vadd.f32 %v1001, 29969.594
    %v1003 = vadd.f32 %v990, 21.0
    %v1004 = vmul.f32 %v1003, %v990
    %v1005 = vadd.f32 %v1004, 175.0
    %v1006 = vmul.f32 %v1005, %v990
    %v1007 = vadd.f32 %v1006, 735.0
    %v1008 = vmul.f32 %v1007, %v990
    %v1009 = vadd.f32 %v1008, 1624.0
    %v1010 = vmul.f32 %v1009, %v990
    %v1011 = vadd.f32 %v1010, 1764.0
    %v1012 = vmul.f32 %v1011, %v990
    %v1013 = vadd.f32 %v1012, 720.0
    %v1014 = vmul.f32 %v1013, %v990
    %v1015 = vadd.f32 %v990, 0.5
    %v1016 = vlog2.pop %v991
    %v1017 = vmul.f32 %v1016, 0.6931472
    %v1018 = vmul.f32 %v1015, %v1017
    %v1019 = vsub.f32 %v1018, %v991
    %v1020 = vadd.f32 %v1019, 0.9189385
    %v1021 = vlog2.pop %v1002
    %v1022 = vmul.f32 %v1021, 0.6931472
    %v1023 = vadd.f32 %v1020, %v1022
    %v1024 = vlog2.pop %v1014
    %v1025 = vmul.f32 %v1024, 0.6931472
    %v1026 = vsub.f32 %v1023, %v1025
    %vm1027 = vcmask 1040384
    %v1028 = vsel %vm1027, %v1026, 0.0
    %1029 = vadd.xlane.f32.xlu0 %v1028
    %v1030 = vpop.xlane.xlu0 %1029
    %v1031 = vrot.slane %v1030, 4
    %v1032 = vadd.f32 %v1030, %v1031
    %v1033 = vrot.slane %v1032, 2
    %v1034 = vadd.f32 %v1032, %v1033
    %v1035 = vrot.slane %v1034, 1
    %v1036 = vadd.f32 %v1034, %v1035
    %s1037 = vtos %v1036
    %s1038 = ssub.f32 %s855, %s1037
    %v1039 = vstv %s1038
    %1040 = vst [vmem:[#allocation7] sm:$0xff] %v1039
    // Predicated region
    $region18: #{tpu_custom_call.1} parent=1 // pred_check
      _
    $region19: #{tpu_custom_call.1} parent=1 // pred_check_branch
      %1042 = sbr.rel (0) target = $region21
    $region20: #{tpu_custom_call.1} parent=1 // pred_region
      %1044 = vsyncadd [#allocation4], 0
      %s1046 = sshll.u32 [#allocation7], 4
      %s1047 = int_to_ptr.vmem [resolvable:$true] %s1046
      %s1048 = sshll.u32 %s2, 4
      %s1049 = int_to_ptr.hbm [resolvable:$true] %s1048
      %1051 = dma.vmem_to_hbm [thread:$0]  %s1047, 128, %s1049, [#allocation4]
    $region21: #{tpu_custom_call.1} parent=1 // pred_fallthru
      _
    // Predicated region
    $region22: #{tpu_custom_call.1} parent=1 // pred_check
      _
    $region23: #{tpu_custom_call.1} parent=1 // pred_check_branch
      %1053 = sbr.rel (0) target = $region25
    $region24: #{tpu_custom_call.1} parent=1 // pred_region
      %1055 = dma.done [#allocation4], 128
    $region25: #{tpu_custom_call.1} parent=1 // pred_fallthru
      _
    %1056 = vsyncpa [#allocation3], 1
    %1057 = vsyncpa [#allocation6], 1
    %1058 = vsyncpa [#allocation4], 1

</llo_original>
